<compile_context>
chip_gen: v5e
topology: v5e:2x2
jax: 0.10.0
libtpu: 0.0.40
codegen_flags: <defaults>
</compile_context>

<pallas_src>
import math
from typing import List, Optional, Tuple

import jax
import jax.numpy as jnp
from jax.experimental import pallas as pl
from jax.experimental.pallas import tpu as pltpu


# ---------------------------------------------------------------------------
# Layout / tiling helpers
# ---------------------------------------------------------------------------

_LANE_CHOICES = (8192, 4096, 2048, 1024, 512, 256, 128)
_TARGET_BLOCK_BYTES = 4 * 1024 * 1024        # ~4 MiB per stream per buffer
_MAX_RESIDENT_RESIDUALS = 12                 # above this -> stacked reduction
_DEFAULT_VMEM_BYTES = 64 * 1024 * 1024       # conservative (v7x) fallback


def _cdiv(a: int, b: int) -> int:
    return -(-a // b)


def _vmem_budgets() -> Tuple[int, int]:
    """(double-buffered stream budget, vmem_limit cap), generation-aware."""
    try:
        cap = int(pltpu.get_tpu_info().vmem_capacity_bytes)
    except Exception:  # query unavailable -> conservative v7x-sized default
        cap = _DEFAULT_VMEM_BYTES
    cap = max(cap, 32 * 1024 * 1024)
    return (45 * cap) // 100, (75 * cap) // 100


def _sublane_multiple(dtype) -> int:
    # f32 -> 8, bf16 -> 16, int8/fp8 -> 32 (sub-32-bit packs along sublanes).
    return max(8, 32 // jnp.dtype(dtype).itemsize)


def _choose_lanes(total: int, sub: int) -> int:
    # Prefer the widest lane count that also leaves rows a multiple of the
    # sublane packing (full (sub, 128) tiles); else the widest exact divisor;
    # else 128 (the non-multiple remainder is handled as a wrapper-side tail).
    for lanes in _LANE_CHOICES:
        if total % (lanes * sub) == 0:
            return lanes
    for lanes in _LANE_CHOICES:
        if total >= lanes and total % lanes == 0:
            return lanes
    return 128


def _pick_tile_rows(rows: int, lanes: int, itemsize: int, num_streams: int,
                    sub: int, stream_budget: int) -> int:
    per_row = lanes * itemsize
    cap = max(sub, stream_budget // (2 * num_streams * per_row))
    tgt = max(sub, _TARGET_BLOCK_BYTES // per_row)
    tile_rows = min(rows, tgt, cap)
    # Keep at least two row tiles so both v7x TensorCores get work.
    if tile_rows >= rows and rows >= 2 * sub:
        tile_rows = rows // 2
    if tile_rows != rows:
        tile_rows = max(sub, (tile_rows // sub) * sub)
    return tile_rows


# ---------------------------------------------------------------------------
# Kernels
# ---------------------------------------------------------------------------

def _make_resident_kernel(n_res: int):
    """All residual streams resident: out = x + sum(residuals), f32 accum."""

    def kernel(*refs):
        x_ref = refs[0]
        out_ref = refs[1 + n_res]
        acc = x_ref[...].astype(jnp.float32)
        for r_ref in refs[1:1 + n_res]:
            acc = acc + r_ref[...].astype(jnp.float32)
        out_ref[...] = acc.astype(out_ref.dtype)

    return kernel


def _reduce_kernel_direct(x_ref, res_ref, out_ref):
    """f32 path: accumulate straight into the resident output block."""
    k = pl.program_id(1)

    @pl.when(k == 0)
    def _():
        out_ref[...] = x_ref[...]

    out_ref[...] += res_ref[0]


def _reduce_kernel_acc(x_ref, res_ref, out_ref, acc_ref):
    """Narrow-dtype path: f32 scratch accumulator, cast back at the end."""
    k = pl.program_id(1)

    @pl.when(k == 0)
    def _():
        acc_ref[...] = x_ref[...].astype(jnp.float32)

    acc_ref[...] += res_ref[0].astype(jnp.float32)

    @pl.when(k == pl.num_programs(1) - 1)
    def _():
        out_ref[...] = acc_ref[...].astype(out_ref.dtype)


# ---------------------------------------------------------------------------
# pallas_call wrappers
# ---------------------------------------------------------------------------

def _merge_resident(x2d: jax.Array, res2d: List[jax.Array], tile_rows: int,
                    lanes: int, limit_cap: int) -> jax.Array:
    rows = x2d.shape[0]
    n_res = len(res2d)
    grid_rows = _cdiv(rows, tile_rows)
    spec = pl.BlockSpec((tile_rows, lanes), lambda i: (i, 0))

    block_bytes = tile_rows * lanes * x2d.dtype.itemsize
    needed = 2 * (n_res + 2) * block_bytes
    vmem_limit = int(min(limit_cap, max(16 * 1024 * 1024, 2 * needed)))

    return pl.pallas_call(
        _make_resident_kernel(n_res),
        out_shape=jax.ShapeDtypeStruct(x2d.shape, x2d.dtype),
        grid_spec=pltpu.PrefetchScalarGridSpec(
            num_scalar_prefetch=0,
            grid=(grid_rows,),
            in_specs=[spec] * (n_res + 1),
            out_specs=spec,
        ),
        compiler_params=pltpu.CompilerParams(
            dimension_semantics=("parallel",),
            vmem_limit_bytes=vmem_limit,
        ),
    )(x2d, *res2d)


def _merge_reduction(x2d: jax.Array, res_stack: jax.Array, tile_rows: int,
                     lanes: int, limit_cap: int) -> jax.Array:
    rows = x2d.shape[0]
    n_res = res_stack.shape[0]
    grid_rows = _cdiv(rows, tile_rows)

    io_spec = pl.BlockSpec((tile_rows, lanes), lambda i, k: (i, 0))
    res_shape = (1, tile_rows, lanes)
    res_map = lambda i, k: (k, i, 0)
    try:
        # Triple-buffer the dominant (residual) stream to hide DMA jitter.
        res_spec = pl.BlockSpec(res_shape, res_map, pipeline_mode=pl.Buffered(3))
    except TypeError:
        res_spec = pl.BlockSpec(res_shape, res_map)

    direct = x2d.dtype == jnp.float32
    itemsize = x2d.dtype.itemsize
    block_bytes = tile_rows * lanes * itemsize
    acc_bytes = 0 if direct else tile_rows * lanes * 4
    needed = 2 * 2 * block_bytes + 3 * block_bytes + acc_bytes
    vmem_limit = int(min(limit_cap, max(16 * 1024 * 1024, 2 * needed)))

    kernel = _reduce_kernel_direct if direct else _reduce_kernel_acc
    scratch = [] if direct else [pltpu.VMEM((tile_rows, lanes), jnp.float32)]

    return pl.pallas_call(
        kernel,
        out_shape=jax.ShapeDtypeStruct(x2d.shape, x2d.dtype),
        grid_spec=pltpu.PrefetchScalarGridSpec(
            num_scalar_prefetch=0,
            grid=(grid_rows, n_res),
            in_specs=[io_spec, res_spec],
            out_specs=io_spec,
            scratch_shapes=scratch,
        ),
        compiler_params=pltpu.CompilerParams(
            dimension_semantics=("parallel", "arbitrary"),
            vmem_limit_bytes=vmem_limit,
        ),
    )(x2d, res_stack)


def residual_merge(x: jax.Array, residuals: List[jax.Array]) -> jax.Array:
    """out = x + sum(residuals), via lane-dense Pallas kernels."""
    if not residuals:
        return x

    for idx, r in enumerate(residuals):
        if r.shape != x.shape or r.dtype != x.dtype:
            raise ValueError(
                f"residual[{idx}] has shape/dtype {r.shape}/{r.dtype}, "
                f"expected {x.shape}/{x.dtype}")

    orig_shape = x.shape
    total = math.prod(x.shape)
    itemsize = jnp.dtype(x.dtype).itemsize
    sub = _sublane_multiple(x.dtype)
    lanes = _choose_lanes(total, sub)
    bulk = (total // lanes) * lanes

    x_flat = x.reshape(-1)
    res_flat = [r.reshape(-1) for r in residuals]

    if bulk == 0:
        # Smaller than one lane-dense tile: plain add in the wrapper.
        out_flat = x_flat
        for r in res_flat:
            out_flat = out_flat + r
        return out_flat.reshape(orig_shape)

    rows = bulk // lanes
    n_res = len(residuals)
    stream_budget, limit_cap = _vmem_budgets()

    use_reduction = n_res > _MAX_RESIDENT_RESIDUALS
    num_streams = 4 if use_reduction else (n_res + 2)
    tile_rows = _pick_tile_rows(rows, lanes, itemsize, num_streams, sub,
                                stream_budget)

    x2d = x_flat[:bulk].reshape(rows, lanes)
    if use_reduction:
        # TODO(synk): for >12 residuals this stack is an extra HBM pass over
        # the residuals; callers with huge ensembles should pre-stack them.
        res_stack = jnp.stack([r[:bulk].reshape(rows, lanes) for r in res_flat])
        out2d = _merge_reduction(x2d, res_stack, tile_rows, lanes, limit_cap)
    else:
        res2d = [r[:bulk].reshape(rows, lanes) for r in res_flat]
        out2d = _merge_resident(x2d, res2d, tile_rows, lanes, limit_cap)

    out_flat = out2d.reshape(-1)
    if bulk != total:
        # Ragged tail (< lanes elements): wrapper-side add, no jnp.pad pass.
        tail = x_flat[bulk:]
        for r in res_flat:
            tail = tail + r[bulk:]
        out_flat = jnp.concatenate([out_flat, tail])
    return out_flat.reshape(orig_shape)


# ---------------------------------------------------------------------------
# Module-level wrapper (AbstractSubmodel forward contract)
# ---------------------------------------------------------------------------

class SubmodelPallas:
    """Concrete realization of AbstractSubmodel's forward contract in JAX/Pallas."""

    def __call__(
        self,
        input_tensor: jax.Array,
        residual: List[Optional[jax.Array]],
    ) -> Tuple[jax.Array, List[jax.Array]]:
        # Residual merge: add every non-None residual into the input stream.
        live = [r for r in residual if r is not None]
        if live:
            output = residual_merge(input_tensor, live)
        else:
            # No residuals to merge: identity. No kernel launch, no zeros array.
            output = input_tensor

        # Residual movement: the merged output joins the residual stream.
        new_residuals: List[jax.Array] = live + [output]
        return output, new_residuals


if __name__ == "__main__":
    key = jax.random.PRNGKey(0)
    B, S, H = 2, 8, 32

    keys = jax.random.split(key, 20)
    x = jax.random.normal(keys[0], (B, S, H), dtype=jnp.float32)
    r0 = jax.random.normal(keys[1], (B, S, H), dtype=jnp.float32)
    r1 = None  # exercise the Optional[...] part of the contract
    r2 = jax.random.normal(keys[2], (B, S, H), dtype=jnp.float32)

    model = SubmodelPallas()

    # Path 1: small residual count -> fully-resident single-pass kernel.
    output, new_residuals = model(x, [r0, r1, r2])
    output = jax.block_until_ready(output)
    ref = x + r0 + r2
    assert jnp.allclose(output, ref, atol=1e-5), "resident-path mismatch"
    assert len(new_residuals) == 3
    assert jnp.allclose(new_residuals[-1], ref, atol=1e-5)

    # Path 2: moderate residual count (<=12) -> still one single-pass resident
    # kernel (no jnp.stack, no extra HBM traffic).
    many = [jax.random.normal(keys[3 + i], (B, S, H), dtype=jnp.float32)
            for i in range(8)]
    output2, new_residuals2 = model(x, many)
    output2 = jax.block_until_ready(output2)
    ref2 = x + sum(many)
    assert jnp.allclose(output2, ref2, atol=1e-4), "resident(8)-path mismatch"
    assert len(new_residuals2) == 9

    # Path 3: very many residuals (>12) -> stacked reduction-grid kernel that
    # accumulates directly into the resident f32 output block.
    lots = [jax.random.normal(keys[3 + i], (B, S, H), dtype=jnp.float32)
            for i in range(13)]
    output3, new_residuals3 = model(x, lots)
    output3 = jax.block_until_ready(output3)
    ref3 = x + sum(lots)
    assert jnp.allclose(output3, ref3, atol=1e-4), "reduction-path mismatch"
    assert len(new_residuals3) == 14

    # Path 4: ragged size (total not a multiple of 128) -> lane-aligned bulk
    # through the kernel plus a tiny wrapper-side tail add (no jnp.pad).
    xr = jax.random.normal(keys[16], (3, 50), dtype=jnp.float32)  # 150 elems
    rr = jax.random.normal(keys[17], (3, 50), dtype=jnp.float32)
    output4, _ = model(xr, [rr])
    output4 = jax.block_until_ready(output4)
    assert jnp.allclose(output4, xr + rr, atol=1e-5), "ragged-path mismatch"

    # Path 5: no live residuals -> identity, no kernel launch.
    output5, new_residuals5 = model(x, [None, None])
    assert output5 is x and len(new_residuals5) == 1

    print("KERNEL_OK")
</pallas_src>

<mosaic_0001>
module attributes {stable_mosaic.version = 11 : i64} {
  func.func @kernel(%arg0: i32, %arg1: memref<1x512xf32, #tpu.memory_space<vmem>>, %arg2: memref<1x512xf32, #tpu.memory_space<vmem>>, %arg3: memref<1x512xf32, #tpu.memory_space<vmem>>, %arg4: memref<1x512xf32, #tpu.memory_space<vmem>>) attributes {dimension_semantics = [#tpu.dimension_semantics<parallel>], iteration_bounds = array<i64: 1>, scalar_prefetch = 0 : i64, scratch_operands = 0 : i64, tpu.core_type = #tpu.core_type<tc>, window_params = [{transform_indices = @transform_0, window_bounds = array<i64: 1, 512>}, {transform_indices = @transform_1, window_bounds = array<i64: 1, 512>}, {transform_indices = @transform_2, window_bounds = array<i64: 1, 512>}, {transform_indices = @transform_3, window_bounds = array<i64: 1, 512>}]} {
    %c0 = arith.constant 0 : index
    %c0_0 = arith.constant 0 : index
    %0 = vector.load %arg1[%c0, %c0_0] : memref<1x512xf32, #tpu.memory_space<vmem>>, vector<1x512xf32>
    %c0_1 = arith.constant 0 : index
    %c0_2 = arith.constant 0 : index
    %1 = vector.load %arg2[%c0_1, %c0_2] : memref<1x512xf32, #tpu.memory_space<vmem>>, vector<1x512xf32>
    %2 = arith.addf %0, %1 : vector<1x512xf32>
    %c0_3 = arith.constant 0 : index
    %c0_4 = arith.constant 0 : index
    %3 = vector.load %arg3[%c0_3, %c0_4] : memref<1x512xf32, #tpu.memory_space<vmem>>, vector<1x512xf32>
    %4 = arith.addf %2, %3 : vector<1x512xf32>
    %c0_5 = arith.constant 0 : index
    %c0_6 = arith.constant 0 : index
    %5 = vector.load %arg4[%c0_5, %c0_6] : memref<1x512xf32, #tpu.memory_space<vmem>>, vector<1x512xf32>
    tpu.vector_store %arg4[%c0_5, %c0_6], %4 {strides = array<i32>} : memref<1x512xf32, #tpu.memory_space<vmem>>, vector<1x512xf32>,
    return
  }
  func.func @transform_0(%arg0: i32) -> (i32, i32) {
    %c0_i32 = arith.constant 0 : i32
    %c0_i32_0 = arith.constant 0 : i32
    return %arg0, %c0_i32 : i32, i32
  }
  func.func @transform_1(%arg0: i32) -> (i32, i32) {
    %c0_i32 = arith.constant 0 : i32
    %c0_i32_0 = arith.constant 0 : i32
    return %arg0, %c0_i32 : i32, i32
  }
  func.func @transform_2(%arg0: i32) -> (i32, i32) {
    %c0_i32 = arith.constant 0 : i32
    %c0_i32_0 = arith.constant 0 : i32
    return %arg0, %c0_i32 : i32, i32
  }
  func.func @transform_3(%arg0: i32) -> (i32, i32) {
    %c0_i32 = arith.constant 0 : i32
    %c0_i32_0 = arith.constant 0 : i32
    return %arg0, %c0_i32 : i32, i32
  }
}

</mosaic_0001>

<llo_original>
// kernel: tpu_custom_call.1
$region0: #{tpu_custom_call.1}
  #allocation0 [shape = 'u32[]', space=smem, size = 0x4, offset = 0x4, fixed_abs, tag = 'smem constant byte address 0x4 - core index']
  #allocation1 [shape = 'u32[72,128]{1,0:T(1,128)}', space=vmem, size = 0x9000, scoped, tag = 'internal scratch']
  %s0 = inlined_call_operand.hbm [shape: f32[1,512], index: 0, kind: input, shape index: {}]
  %s1 = inlined_call_operand.hbm [shape: f32[1,512], index: 1, kind: input, shape index: {}]
  %s2 = inlined_call_operand.hbm [shape: f32[1,512], index: 2, kind: input, shape index: {}]
  %s3 = inlined_call_operand.hbm [shape: f32[1,512], index: 3, kind: output, shape index: {}]
  %s4 = sld [smem:[#allocation0]]
  $region34: #{tpu_custom_call.1} parent=0
    _
  %s6 = ssub.s32 1, %s4
  %s7 = scalar_select 0, %s6, %s4
  $region1: #{tpu_custom_call.1} parent=0
    #allocation2 [shape = 'u8[2048]{0}', space=vmem, size = 0x800, scoped, tag = 'input window, operand 0, single buffered']
    #allocation3 [shape = 's32[1]{0}', space=sflag, size = 0x4, scoped, tag = 'scoped memory for tpu_custom_call.1']
    #allocation4 [shape = 's32[1]{0}', space=sflag, size = 0x4, scoped, tag = 'scoped memory for tpu_custom_call.1']
    #allocation5 [shape = 'u8[2048]{0}', space=vmem, size = 0x800, scoped, tag = 'input window, operand 1, single buffered']
    #allocation6 [shape = 's32[1]{0}', space=sflag, size = 0x4, scoped, tag = 'scoped memory for tpu_custom_call.1']
    #allocation7 [shape = 'u8[2048]{0}', space=vmem, size = 0x800, scoped, tag = 'input window, operand 2, single buffered']
    #allocation8 [shape = 'u8[2048]{0}', space=vmem, size = 0x800, scoped, tag = 'output window, operand 0, single buffered']
    %8 = vsyncpa [#allocation3], 0
    %9 = vsyncpa [#allocation6], 0
    %10 = vsyncpa [#allocation4], 0
    // Predicated region
    $region2: #{tpu_custom_call.1} parent=1 // pred_check
      _
    $region3: #{tpu_custom_call.1} parent=1 // pred_check_branch
      %12 = sbr.rel (0) target = $region5
    $region4: #{tpu_custom_call.1} parent=1 // pred_region
      %14 = vsyncadd [#allocation3], 0
      %s16 = sshll.u32 %s0, 4
      %s17 = int_to_ptr.hbm [resolvable:$true] %s16
      %s18 = sshll.u32 [#allocation2], 4
      %s19 = int_to_ptr.vmem [resolvable:$true] %s18
      %21 = dma.hbm_to_vmem [thread:$0]  %s17, 64, %s19, [#allocation3]
    $region5: #{tpu_custom_call.1} parent=1 // pred_fallthru
      _
    // Predicated region
    $region6: #{tpu_custom_call.1} parent=1 // pred_check
      _
    $region7: #{tpu_custom_call.1} parent=1 // pred_check_branch
      %23 = sbr.rel (0) target = $region9
    $region8: #{tpu_custom_call.1} parent=1 // pred_region
      %25 = vsyncadd [#allocation6], 0
      %s27 = sshll.u32 %s1, 4
      %s28 = int_to_ptr.hbm [resolvable:$true] %s27
      %s29 = sshll.u32 [#allocation5], 4
      %s30 = int_to_ptr.vmem [resolvable:$true] %s29
      %32 = dma.hbm_to_vmem [thread:$0]  %s28, 64, %s30, [#allocation6]
    $region9: #{tpu_custom_call.1} parent=1 // pred_fallthru
      _
    // Predicated region
    $region10: #{tpu_custom_call.1} parent=1 // pred_check
      _
    $region11: #{tpu_custom_call.1} parent=1 // pred_check_branch
      %34 = sbr.rel (0) target = $region13
    $region12: #{tpu_custom_call.1} parent=1 // pred_region
      %36 = vsyncadd [#allocation6], 0
      %s38 = sshll.u32 %s2, 4
      %s39 = int_to_ptr.hbm [resolvable:$true] %s38
      %s40 = sshll.u32 [#allocation7], 4
      %s41 = int_to_ptr.vmem [resolvable:$true] %s40
      %43 = dma.hbm_to_vmem [thread:$0]  %s39, 64, %s41, [#allocation6]
    $region13: #{tpu_custom_call.1} parent=1 // pred_fallthru
      _
    // Predicated region
    $region14: #{tpu_custom_call.1} parent=1 // pred_check
      _
    $region15: #{tpu_custom_call.1} parent=1 // pred_check_branch
      %45 = sbr.rel (0) target = $region17
    $region16: #{tpu_custom_call.1} parent=1 // pred_region
      %47 = dma.done [#allocation3], 64
    $region17: #{tpu_custom_call.1} parent=1 // pred_fallthru
      _
    // Predicated region
    $region18: #{tpu_custom_call.1} parent=1 // pred_check
      _
    $region19: #{tpu_custom_call.1} parent=1 // pred_check_branch
      %49 = sbr.rel (0) target = $region21
    $region20: #{tpu_custom_call.1} parent=1 // pred_region
      %51 = dma.done [#allocation6], 64
    $region21: #{tpu_custom_call.1} parent=1 // pred_fallthru
      _
    // Predicated region
    $region22: #{tpu_custom_call.1} parent=1 // pred_check
      _
    $region23: #{tpu_custom_call.1} parent=1 // pred_check_branch
      %53 = sbr.rel (0) target = $region25
    $region24: #{tpu_custom_call.1} parent=1 // pred_region
      %55 = dma.done [#allocation6], 64
    $region25: #{tpu_custom_call.1} parent=1 // pred_fallthru
      _
    %v56 = vld [vmem:[#allocation2] sm:$0xf]
    %v57 = vld [vmem:[#allocation5] sm:$0xf]
    %v58 = vadd.f32 %v56, %v57
    %v59 = vld [vmem:[#allocation7] sm:$0xf]
    %v60 = vadd.f32 %v58, %v59
    %v61 = vlaneseq
    %vm62 = vcmp.ge.s32.totalorder %v61, 0
    %vm63 = vcmp.lt.s32.totalorder %v61, 512
    %vm64 = vmand %vm62, %vm63
    %65 = vst.msk [vmem:[#allocation8] sm:$0xf] %vm64, %v60
    // Predicated region
    $region26: #{tpu_custom_call.1} parent=1 // pred_check
      _
    $region27: #{tpu_custom_call.1} parent=1 // pred_check_branch
      %67 = sbr.rel (0) target = $region29
    $region28: #{tpu_custom_call.1} parent=1 // pred_region
      %69 = vsyncadd [#allocation4], 0
      %s71 = sshll.u32 [#allocation8], 4
      %s72 = int_to_ptr.vmem [resolvable:$true] %s71
      %s73 = sshll.u32 %s3, 4
      %s74 = int_to_ptr.hbm [resolvable:$true] %s73
      %76 = dma.vmem_to_hbm [thread:$0]  %s72, 64, %s74, [#allocation4]
    $region29: #{tpu_custom_call.1} parent=1 // pred_fallthru
      _
    // Predicated region
    $region30: #{tpu_custom_call.1} parent=1 // pred_check
      _
    $region31: #{tpu_custom_call.1} parent=1 // pred_check_branch
      %78 = sbr.rel (0) target = $region33
    $region32: #{tpu_custom_call.1} parent=1 // pred_region
      %80 = dma.done [#allocation4], 64
    $region33: #{tpu_custom_call.1} parent=1 // pred_fallthru
      _
    %81 = vsyncpa [#allocation3], 1
    %82 = vsyncpa [#allocation6], 1
    %83 = vsyncpa [#allocation4], 1

</llo_original>
